<compile_context>
chip_gen: v6e
topology: v6e:2x2x1
jax: 0.10.0
libtpu: 0.0.40
codegen_flags: <defaults>
</compile_context>

<pallas_src>
import functools

import numpy as np

import jax
import jax.numpy as jnp
from jax import lax
from jax.experimental import pallas as pl
from jax.experimental.pallas import tpu as pltpu

WINDOW_SIZE = 5
EPSILON2 = 1e-4      # params.epsilon2 in the reference code (deterministic synthetic choice)
LANE = 128

# PyTorch bicubic (a=-0.75), scale 0.5, align_corners=False => constant phase t=0.5.
_CUBIC_W = (-0.09375, 0.59375, 0.59375, -0.09375)


# --------------------------------------------------------------------------------------
# Pallas kernel: one grid step == `gb` packed slabs belonging to one pyramid level.
# --------------------------------------------------------------------------------------
def _struct_loss_pyramid_kernel(level_ref, mask_ref, x1_ref, x2_ref, out_ref, *, ws, eps2):
    """Fused structural-loss partial sum for one block of packed image slabs.

    x1_ref/x2_ref : (gb, hs, ls) f32, images packed in 2-D (sublanes x lanes) per slab.
    mask_ref      : (1, hs, ls) f32, per-level validity mask (centered-window positions),
                    pre-scaled by pyramid_weight / (N * Hp * Wp); invalid positions 0.
    out_ref       : (1, 8, 128) f32, the partial sum splat over the whole tile.
    """
    del level_ref                      # only consumed by the BlockSpec index_maps
    x1 = x1_ref[...]
    x2 = x2_ref[...]
    gb, hs, ls = x1.shape
    inv_n = jnp.float32(1.0 / (ws * ws))
    half = ws // 2                     # ws is odd (checked by the wrapper)

    # Hoisted elementwise products: computed once per block, reused by every shift.
    planes = [x1, x2, x1 * x1, x2 * x2, x1 * x2]

    # Separable box sums with full-width, (8,128)-aligned rotations (XLU slot).
    # Offsets are symmetric around 0, so the box sum at position p covers
    # [p-half, p+half] regardless of the rotate sign convention; wrap-around
    # positions are zeroed by the mask.
    def box_sum(ps, axis, size):
        acc = list(ps)                              # off == 0 term
        for off in range(-half, half + 1):
            if off == 0:
                continue
            shift = (-off) % size
            for i, p in enumerate(ps):
                acc[i] = acc[i] + pltpu.roll(p, shift, axis)
        return acc

    planes = box_sum(planes, axis=2, size=ls)       # lane-axis pass
    s1, s2, q1, q2, s12 = box_sum(planes, axis=1, size=hs)   # sublane-axis pass

    # Closed-form per-window-position loss:
    #   sum_taps((a-mu1)*inv1 - (b-mu2)*inv2)^2
    #     = ws^2 * (v1*inv1^2 + v2*inv2^2 - 2*c12*inv1*inv2)
    # The ws^2 cancels against MSELoss's ws^2 in the denominator; the remaining
    # weight / (N*Hp*Wp) normalization is folded into the mask.
    mu1 = s1 * inv_n
    mu2 = s2 * inv_n
    v1 = q1 * inv_n - mu1 * mu1          # raw sigma^2 (unclamped), as in the reference
    v2 = q2 * inv_n - mu2 * mu2
    c12 = s12 * inv_n - mu1 * mu2
    # eps2 appears twice, exactly as in the reference:
    #   std = sqrt(max(sigma^2, 0) + eps2) ; denominator = std + eps2
    std1 = jnp.sqrt(jnp.maximum(v1, 0.0) + eps2)
    std2 = jnp.sqrt(jnp.maximum(v2, 0.0) + eps2)
    inv1 = pl.reciprocal(std1 + eps2, approx=False)   # exact (parity with torch divide)
    inv2 = pl.reciprocal(std2 + eps2, approx=False)

    per_pos = v1 * (inv1 * inv1) + v2 * (inv2 * inv2) - 2.0 * c12 * (inv1 * inv2)
    per_pos = jnp.maximum(per_pos, 0.0)               # analytically a sum of squares
    partial = jnp.sum(per_pos * mask_ref[...])

    # Lane-dense output: splat the partial over the (8,128) tile; the host divides the
    # dense grand total by 8*128 once (no iota/where, no masked single-element store).
    out_ref[...] = jnp.full(out_ref.shape, partial, dtype=jnp.float32)


# --------------------------------------------------------------------------------------
# Glue: PyTorch-exact bicubic 0.5x downsample (align_corners=False, a=-0.75, no AA)
# --------------------------------------------------------------------------------------
def _downsample_half_1d(x, axis):
    n = x.shape[axis]
    first = lax.slice_in_dim(x, 0, 1, axis=axis)
    last = lax.slice_in_dim(x, n - 1, n, axis=axis)
    xp = jnp.concatenate([first, x, last], axis=axis)   # replicate pad == clamped indexing
    out = None
    for k, wk in enumerate(_CUBIC_W):
        sl = lax.slice_in_dim(xp, k, k + n - 1, stride=2, axis=axis)
        out = wk * sl if out is None else out + wk * sl
    return out


def _bicubic_downsample_half(x):
    # x: (B, C, H, W) -> (B, C, H//2, W//2), matching F.interpolate(..., 'bicubic')
    x = _downsample_half_1d(x, axis=2)
    x = _downsample_half_1d(x, axis=3)
    return x


def _round_up(v, m):
    return -(-v // m) * m


def _vmem_capacity_bytes():
    try:
        info = pltpu.get_tpu_info()
        cap = getattr(info, "vmem_capacity_bytes", None)
        if cap:
            return int(cap)
    except Exception:
        pass
    return 64 * 1024 * 1024   # conservative fallback (v7x per-TensorCore VMEM)


# --------------------------------------------------------------------------------------
# StructLoss.forward equivalent (whole pyramid fused into a single pallas_call)
# --------------------------------------------------------------------------------------
def struct_loss_forward(fake, hdr_input_original_gray_norm, hdr_input, pyramid_weight_list,
                        window_size=WINDOW_SIZE):
    # hdr_input_original_gray_norm is unused by the PyTorch forward as well.
    # TODO(synk): crop_input_hdr_batch with final_shape_addition=0 is an identity crop; skipped.
    del hdr_input_original_gray_norm
    ws = int(window_size)
    if ws % 2 != 1:
        # TODO(synk): even window sizes need a direction-committed shift convention.
        raise NotImplementedError("window_size must be odd (module default is 5)")
    half = ws // 2
    eps2 = float(EPSILON2)
    weights = [float(w) for w in pyramid_weight_list]
    n_levels = len(weights)

    B, C, H0, W0 = fake.shape
    N = B * C

    # ---- centering (loss-invariant, one host-side constant per input) ----------------
    # Keeps the kernel's E[x^2]-E[x]^2 well conditioned without a per-step in-kernel
    # reduction; bicubic taps sum to 1, so the whole pyramid stays centered.
    x1_0 = fake.astype(jnp.float32)
    x2_0 = hdr_input.astype(jnp.float32)
    x1_0 = x1_0 - jnp.mean(x1_0)
    x2_0 = x2_0 - jnp.mean(x2_0)

    # ---- build pyramid levels in plain JAX --------------------------------------------
    lvl1, lvl2 = [x1_0], [x2_0]
    for _ in range(n_levels - 1):
        lvl1.append(_bicubic_downsample_half(lvl1[-1]))
        lvl2.append(_bicubic_downsample_half(lvl2[-1]))

    shapes = [(int(a.shape[2]), int(a.shape[3])) for a in lvl1]
    for (h, w) in shapes:
        if h < ws or w < ws:
            raise ValueError(f"pyramid level size {(h, w)} is smaller than window_size={ws}")

    # ---- static 2-D packing plan --------------------------------------------------------
    hs = _round_up(max(h for h, _ in shapes), 8)                 # common slab height
    lane_slab = max(LANE, _round_up(max(w for _, w in shapes), LANE))

    pw_list, ph_list, g_need = [], [], []
    for (h, w) in shapes:
        p_w = max(1, lane_slab // w)                             # images per slab, lane axis
        p_h = max(1, hs // h)                                    # images per slab, sublane axis
        pw_list.append(p_w)
        ph_list.append(p_h)
        g_need.append(-(-N // (p_w * p_h)))                      # slabs needed for level

    # Per-step block: as many slabs as the VMEM budget allows, never more than the
    # smallest level needs (keeps zero-slab padding bounded).
    vmem_cap = _vmem_capacity_bytes()
    vmem_limit = min(int(vmem_cap * 0.75), 112 * 1024 * 1024)    # 96 MiB on 128 MiB chips, 48 MiB on v7x
    slab_bytes = hs * lane_slab * 4
    # ~16 block-sized intermediates + 2 inputs x 2 pipeline buffers + mask live at once.
    block_budget = max(512 * 1024, vmem_limit // 40)
    gb = int(max(1, min(block_budget // slab_bytes, min(g_need))))
    # TODO(synk): for very large images (one slab >> block_budget) tile hs with a
    # (ws-1)-row halo on a second grid axis to stay inside v7x's 64 MiB VMEM.

    # ---- pack every level into (G, hs, lane_slab) slabs + per-level scaled masks -------
    x1_parts, x2_parts, level_id_list = [], [], []
    masks_np = np.zeros((n_levels, hs, lane_slab), np.float32)
    for lvl in range(n_levels):
        h, w = shapes[lvl]
        p_w, p_h = pw_list[lvl], ph_list[lvl]
        cap = p_w * p_h
        g = _round_up(g_need[lvl], gb)                           # slab count, multiple of gb
        n_pad = g * cap                                          # images incl. zero padding

        def pack(x):
            x = x.reshape(N, h, w)
            x = jnp.pad(x, ((0, n_pad - N), (0, 0), (0, 0)))     # zero images contribute 0
            x = x.reshape(g, p_h, p_w, h, w).transpose(0, 1, 3, 2, 4)
            x = x.reshape(g, p_h * h, p_w * w)
            return jnp.pad(x, ((0, 0), (0, hs - p_h * h), (0, lane_slab - p_w * w)))

        # TODO(synk): when p_w == p_h == 1 the repack of the largest level is an extra HBM
        # round trip; CompilerParams(allow_input_fusion=...) could let XLA fuse it away.
        x1_parts.append(pack(lvl1[lvl]))
        x2_parts.append(pack(lvl2[lvl]))
        level_id_list.extend([lvl] * (g // gb))

        hp, wp = h - ws + 1, w - ws + 1
        scale = weights[lvl] / float(N * hp * wp)                # MSE 1/count (ws^2 cancelled)
        for rh in range(p_h):
            for cw in range(p_w):
                r0, c0 = rh * h + half, cw * w + half            # centered-window positions
                masks_np[lvl, r0:r0 + hp, c0:c0 + wp] = scale

    x1_all = jnp.concatenate(x1_parts, axis=0)                   # (G_total, hs, lane_slab)
    x2_all = jnp.concatenate(x2_parts, axis=0)
    level_ids = jnp.asarray(level_id_list, jnp.int32)            # (num_steps,)
    masks = jnp.asarray(masks_np)                                # (n_levels, hs, lane_slab)
    num_steps = len(level_id_list)

    kernel = functools.partial(_struct_loss_pyramid_kernel, ws=ws, eps2=eps2)
    partials = pl.pallas_call(
        kernel,
        out_shape=jax.ShapeDtypeStruct((num_steps, 8, LANE), jnp.float32),
        grid_spec=pltpu.PrefetchScalarGridSpec(
            num_scalar_prefetch=1,
            grid=(num_steps,),
            in_specs=[
                pl.BlockSpec((1, hs, lane_slab), lambda i, lv: (lv[i], 0, 0)),       # level mask
                pl.BlockSpec((gb, hs, lane_slab), lambda i, lv: (i, 0, 0)),          # img1 slabs
                pl.BlockSpec((gb, hs, lane_slab), lambda i, lv: (i, 0, 0)),          # img2 slabs
            ],
            out_specs=pl.BlockSpec((1, 8, LANE), lambda i, lv: (i, 0, 0)),
        ),
        compiler_params=pltpu.CompilerParams(
            # "parallel": steps are independent, so v7x megacore may split them across TCs.
            dimension_semantics=("parallel",),
            vmem_limit_bytes=int(vmem_limit),
        ),
    )(level_ids, masks, x1_all, x2_all)

    # Each step splat its partial over an (8,128) tile -> divide the dense sum once.
    return jnp.sum(partials) * (1.0 / (8 * LANE))


if __name__ == "__main__":
    key = jax.random.PRNGKey(0)
    k1, k2 = jax.random.split(key)

    # channel must be 1: the module's window is (1, C, ws, ws) with groups=C, which only
    # type-checks for C == 1 (matching the PyTorch module's default self.channel = 1).
    B, C, H, W = 2, 1, 32, 32
    fake = jax.random.uniform(k1, (B, C, H, W), dtype=jnp.float32)
    hdr_input = jax.random.uniform(k2, (B, C, H, W), dtype=jnp.float32)
    hdr_gray_norm = jnp.zeros_like(fake)          # unused by forward

    pyramid_weight_list = [0.6, 0.3, 0.1]         # deterministic synthetic weights

    fwd = jax.jit(functools.partial(struct_loss_forward,
                                    pyramid_weight_list=pyramid_weight_list))
    loss = fwd(fake, hdr_gray_norm, hdr_input)
    jax.block_until_ready(loss)
    print("KERNEL_OK")
</pallas_src>

<mosaic_0001>
module attributes {stable_mosaic.version = 11 : i64} {
  func.func @_struct_loss_pyramid_kernel(%arg0: i32, %arg1: memref<3xi32, #tpu.memory_space<smem>>, %arg2: memref<1x32x128xf32, #tpu.memory_space<vmem>>, %arg3: memref<1x32x128xf32, #tpu.memory_space<vmem>>, %arg4: memref<1x32x128xf32, #tpu.memory_space<vmem>>, %arg5: memref<1x8x128xf32, #tpu.memory_space<vmem>>) attributes {dimension_semantics = [#tpu.dimension_semantics<parallel>], iteration_bounds = array<i64: 3>, scalar_prefetch = 1 : i64, scratch_operands = 0 : i64, tpu.core_type = #tpu.core_type<tc>, window_params = [{transform_indices = @transform_0, window_bounds = array<i64: 1, 32, 128>}, {transform_indices = @transform_1, window_bounds = array<i64: 1, 32, 128>}, {transform_indices = @transform_2, window_bounds = array<i64: 1, 32, 128>}, {transform_indices = @transform_3, window_bounds = array<i64: 1, 8, 128>}]} {
    %c0 = arith.constant 0 : index
    %c0_0 = arith.constant 0 : index
    %c0_1 = arith.constant 0 : index
    %0 = vector.load %arg3[%c0, %c0_0, %c0_1] : memref<1x32x128xf32, #tpu.memory_space<vmem>>, vector<1x32x128xf32>
    %c0_2 = arith.constant 0 : index
    %c0_3 = arith.constant 0 : index
    %c0_4 = arith.constant 0 : index
    %1 = vector.load %arg4[%c0_2, %c0_3, %c0_4] : memref<1x32x128xf32, #tpu.memory_space<vmem>>, vector<1x32x128xf32>
    %2 = arith.mulf %0, %0 : vector<1x32x128xf32>
    %3 = arith.mulf %1, %1 : vector<1x32x128xf32>
    %4 = arith.mulf %0, %1 : vector<1x32x128xf32>
    %c2_i32 = arith.constant 2 : i32
    %5 = tpu.dynamic_rotate %0 by %c2_i32 dim 2 : vector<1x32x128xf32>, i32 -> vector<1x32x128xf32>
    %6 = arith.addf %0, %5 : vector<1x32x128xf32>
    %c2_i32_5 = arith.constant 2 : i32
    %7 = tpu.dynamic_rotate %1 by %c2_i32_5 dim 2 : vector<1x32x128xf32>, i32 -> vector<1x32x128xf32>
    %8 = arith.addf %1, %7 : vector<1x32x128xf32>
    %c2_i32_6 = arith.constant 2 : i32
    %9 = tpu.dynamic_rotate %2 by %c2_i32_6 dim 2 : vector<1x32x128xf32>, i32 -> vector<1x32x128xf32>
    %10 = arith.addf %2, %9 : vector<1x32x128xf32>
    %c2_i32_7 = arith.constant 2 : i32
    %11 = tpu.dynamic_rotate %3 by %c2_i32_7 dim 2 : vector<1x32x128xf32>, i32 -> vector<1x32x128xf32>
    %12 = arith.addf %3, %11 : vector<1x32x128xf32>
    %c2_i32_8 = arith.constant 2 : i32
    %13 = tpu.dynamic_rotate %4 by %c2_i32_8 dim 2 : vector<1x32x128xf32>, i32 -> vector<1x32x128xf32>
    %14 = arith.addf %4, %13 : vector<1x32x128xf32>
    %c1_i32 = arith.constant 1 : i32
    %15 = tpu.dynamic_rotate %0 by %c1_i32 dim 2 : vector<1x32x128xf32>, i32 -> vector<1x32x128xf32>
    %16 = arith.addf %6, %15 : vector<1x32x128xf32>
    %c1_i32_9 = arith.constant 1 : i32
    %17 = tpu.dynamic_rotate %1 by %c1_i32_9 dim 2 : vector<1x32x128xf32>, i32 -> vector<1x32x128xf32>
    %18 = arith.addf %8, %17 : vector<1x32x128xf32>
    %c1_i32_10 = arith.constant 1 : i32
    %19 = tpu.dynamic_rotate %2 by %c1_i32_10 dim 2 : vector<1x32x128xf32>, i32 -> vector<1x32x128xf32>
    %20 = arith.addf %10, %19 : vector<1x32x128xf32>
    %c1_i32_11 = arith.constant 1 : i32
    %21 = tpu.dynamic_rotate %3 by %c1_i32_11 dim 2 : vector<1x32x128xf32>, i32 -> vector<1x32x128xf32>
    %22 = arith.addf %12, %21 : vector<1x32x128xf32>
    %c1_i32_12 = arith.constant 1 : i32
    %23 = tpu.dynamic_rotate %4 by %c1_i32_12 dim 2 : vector<1x32x128xf32>, i32 -> vector<1x32x128xf32>
    %24 = arith.addf %14, %23 : vector<1x32x128xf32>
    %c127_i32 = arith.constant 127 : i32
    %25 = tpu.dynamic_rotate %0 by %c127_i32 dim 2 : vector<1x32x128xf32>, i32 -> vector<1x32x128xf32>
    %26 = arith.addf %16, %25 : vector<1x32x128xf32>
    %c127_i32_13 = arith.constant 127 : i32
    %27 = tpu.dynamic_rotate %1 by %c127_i32_13 dim 2 : vector<1x32x128xf32>, i32 -> vector<1x32x128xf32>
    %28 = arith.addf %18, %27 : vector<1x32x128xf32>
    %c127_i32_14 = arith.constant 127 : i32
    %29 = tpu.dynamic_rotate %2 by %c127_i32_14 dim 2 : vector<1x32x128xf32>, i32 -> vector<1x32x128xf32>
    %30 = arith.addf %20, %29 : vector<1x32x128xf32>
    %c127_i32_15 = arith.constant 127 : i32
    %31 = tpu.dynamic_rotate %3 by %c127_i32_15 dim 2 : vector<1x32x128xf32>, i32 -> vector<1x32x128xf32>
    %32 = arith.addf %22, %31 : vector<1x32x128xf32>
    %c127_i32_16 = arith.constant 127 : i32
    %33 = tpu.dynamic_rotate %4 by %c127_i32_16 dim 2 : vector<1x32x128xf32>, i32 -> vector<1x32x128xf32>
    %34 = arith.addf %24, %33 : vector<1x32x128xf32>
    %c126_i32 = arith.constant 126 : i32
    %35 = tpu.dynamic_rotate %0 by %c126_i32 dim 2 : vector<1x32x128xf32>, i32 -> vector<1x32x128xf32>
    %36 = arith.addf %26, %35 : vector<1x32x128xf32>
    %c126_i32_17 = arith.constant 126 : i32
    %37 = tpu.dynamic_rotate %1 by %c126_i32_17 dim 2 : vector<1x32x128xf32>, i32 -> vector<1x32x128xf32>
    %38 = arith.addf %28, %37 : vector<1x32x128xf32>
    %c126_i32_18 = arith.constant 126 : i32
    %39 = tpu.dynamic_rotate %2 by %c126_i32_18 dim 2 : vector<1x32x128xf32>, i32 -> vector<1x32x128xf32>
    %40 = arith.addf %30, %39 : vector<1x32x128xf32>
    %c126_i32_19 = arith.constant 126 : i32
    %41 = tpu.dynamic_rotate %3 by %c126_i32_19 dim 2 : vector<1x32x128xf32>, i32 -> vector<1x32x128xf32>
    %42 = arith.addf %32, %41 : vector<1x32x128xf32>
    %c126_i32_20 = arith.constant 126 : i32
    %43 = tpu.dynamic_rotate %4 by %c126_i32_20 dim 2 : vector<1x32x128xf32>, i32 -> vector<1x32x128xf32>
    %44 = arith.addf %34, %43 : vector<1x32x128xf32>
    %c2_i32_21 = arith.constant 2 : i32
    %45 = tpu.dynamic_rotate %36 by %c2_i32_21 dim 1 : vector<1x32x128xf32>, i32 -> vector<1x32x128xf32>
    %46 = arith.addf %36, %45 : vector<1x32x128xf32>
    %c2_i32_22 = arith.constant 2 : i32
    %47 = tpu.dynamic_rotate %38 by %c2_i32_22 dim 1 : vector<1x32x128xf32>, i32 -> vector<1x32x128xf32>
    %48 = arith.addf %38, %47 : vector<1x32x128xf32>
    %c2_i32_23 = arith.constant 2 : i32
    %49 = tpu.dynamic_rotate %40 by %c2_i32_23 dim 1 : vector<1x32x128xf32>, i32 -> vector<1x32x128xf32>
    %50 = arith.addf %40, %49 : vector<1x32x128xf32>
    %c2_i32_24 = arith.constant 2 : i32
    %51 = tpu.dynamic_rotate %42 by %c2_i32_24 dim 1 : vector<1x32x128xf32>, i32 -> vector<1x32x128xf32>
    %52 = arith.addf %42, %51 : vector<1x32x128xf32>
    %c2_i32_25 = arith.constant 2 : i32
    %53 = tpu.dynamic_rotate %44 by %c2_i32_25 dim 1 : vector<1x32x128xf32>, i32 -> vector<1x32x128xf32>
    %54 = arith.addf %44, %53 : vector<1x32x128xf32>
    %c1_i32_26 = arith.constant 1 : i32
    %55 = tpu.dynamic_rotate %36 by %c1_i32_26 dim 1 : vector<1x32x128xf32>, i32 -> vector<1x32x128xf32>
    %56 = arith.addf %46, %55 : vector<1x32x128xf32>
    %c1_i32_27 = arith.constant 1 : i32
    %57 = tpu.dynamic_rotate %38 by %c1_i32_27 dim 1 : vector<1x32x128xf32>, i32 -> vector<1x32x128xf32>
    %58 = arith.addf %48, %57 : vector<1x32x128xf32>
    %c1_i32_28 = arith.constant 1 : i32
    %59 = tpu.dynamic_rotate %40 by %c1_i32_28 dim 1 : vector<1x32x128xf32>, i32 -> vector<1x32x128xf32>
    %60 = arith.addf %50, %59 : vector<1x32x128xf32>
    %c1_i32_29 = arith.constant 1 : i32
    %61 = tpu.dynamic_rotate %42 by %c1_i32_29 dim 1 : vector<1x32x128xf32>, i32 -> vector<1x32x128xf32>
    %62 = arith.addf %52, %61 : vector<1x32x128xf32>
    %c1_i32_30 = arith.constant 1 : i32
    %63 = tpu.dynamic_rotate %44 by %c1_i32_30 dim 1 : vector<1x32x128xf32>, i32 -> vector<1x32x128xf32>
    %64 = arith.addf %54, %63 : vector<1x32x128xf32>
    %c31_i32 = arith.constant 31 : i32
    %65 = tpu.dynamic_rotate %36 by %c31_i32 dim 1 : vector<1x32x128xf32>, i32 -> vector<1x32x128xf32>
    %66 = arith.addf %56, %65 : vector<1x32x128xf32>
    %c31_i32_31 = arith.constant 31 : i32
    %67 = tpu.dynamic_rotate %38 by %c31_i32_31 dim 1 : vector<1x32x128xf32>, i32 -> vector<1x32x128xf32>
    %68 = arith.addf %58, %67 : vector<1x32x128xf32>
    %c31_i32_32 = arith.constant 31 : i32
    %69 = tpu.dynamic_rotate %40 by %c31_i32_32 dim 1 : vector<1x32x128xf32>, i32 -> vector<1x32x128xf32>
    %70 = arith.addf %60, %69 : vector<1x32x128xf32>
    %c31_i32_33 = arith.constant 31 : i32
    %71 = tpu.dynamic_rotate %42 by %c31_i32_33 dim 1 : vector<1x32x128xf32>, i32 -> vector<1x32x128xf32>
    %72 = arith.addf %62, %71 : vector<1x32x128xf32>
    %c31_i32_34 = arith.constant 31 : i32
    %73 = tpu.dynamic_rotate %44 by %c31_i32_34 dim 1 : vector<1x32x128xf32>, i32 -> vector<1x32x128xf32>
    %74 = arith.addf %64, %73 : vector<1x32x128xf32>
    %c30_i32 = arith.constant 30 : i32
    %75 = tpu.dynamic_rotate %36 by %c30_i32 dim 1 : vector<1x32x128xf32>, i32 -> vector<1x32x128xf32>
    %76 = arith.addf %66, %75 : vector<1x32x128xf32>
    %c30_i32_35 = arith.constant 30 : i32
    %77 = tpu.dynamic_rotate %38 by %c30_i32_35 dim 1 : vector<1x32x128xf32>, i32 -> vector<1x32x128xf32>
    %78 = arith.addf %68, %77 : vector<1x32x128xf32>
    %c30_i32_36 = arith.constant 30 : i32
    %79 = tpu.dynamic_rotate %40 by %c30_i32_36 dim 1 : vector<1x32x128xf32>, i32 -> vector<1x32x128xf32>
    %80 = arith.addf %70, %79 : vector<1x32x128xf32>
    %c30_i32_37 = arith.constant 30 : i32
    %81 = tpu.dynamic_rotate %42 by %c30_i32_37 dim 1 : vector<1x32x128xf32>, i32 -> vector<1x32x128xf32>
    %82 = arith.addf %72, %81 : vector<1x32x128xf32>
    %c30_i32_38 = arith.constant 30 : i32
    %83 = tpu.dynamic_rotate %44 by %c30_i32_38 dim 1 : vector<1x32x128xf32>, i32 -> vector<1x32x128xf32>
    %84 = arith.addf %74, %83 : vector<1x32x128xf32>
    %cst = arith.constant 4.000000e-02 : f32
    %85 = vector.broadcast %cst : f32 to vector<1x32x128xf32>
    %86 = arith.mulf %76, %85 : vector<1x32x128xf32>
    %cst_39 = arith.constant 4.000000e-02 : f32
    %87 = vector.broadcast %cst_39 : f32 to vector<1x32x128xf32>
    %88 = arith.mulf %78, %87 : vector<1x32x128xf32>
    %cst_40 = arith.constant 4.000000e-02 : f32
    %89 = vector.broadcast %cst_40 : f32 to vector<1x32x128xf32>
    %90 = arith.mulf %80, %89 : vector<1x32x128xf32>
    %91 = arith.mulf %86, %86 : vector<1x32x128xf32>
    %92 = arith.subf %90, %91 : vector<1x32x128xf32>
    %cst_41 = arith.constant 4.000000e-02 : f32
    %93 = vector.broadcast %cst_41 : f32 to vector<1x32x128xf32>
    %94 = arith.mulf %82, %93 : vector<1x32x128xf32>
    %95 = arith.mulf %88, %88 : vector<1x32x128xf32>
    %96 = arith.subf %94, %95 : vector<1x32x128xf32>
    %cst_42 = arith.constant 4.000000e-02 : f32
    %97 = vector.broadcast %cst_42 : f32 to vector<1x32x128xf32>
    %98 = arith.mulf %84, %97 : vector<1x32x128xf32>
    %99 = arith.mulf %86, %88 : vector<1x32x128xf32>
    %100 = arith.subf %98, %99 : vector<1x32x128xf32>
    %cst_43 = arith.constant 0.000000e+00 : f32
    %101 = vector.broadcast %cst_43 : f32 to vector<1x32x128xf32>
    %102 = arith.maximumf %92, %101 : vector<1x32x128xf32>
    %cst_44 = arith.constant 9.99999974E-5 : f32
    %103 = vector.broadcast %cst_44 : f32 to vector<1x32x128xf32>
    %104 = arith.addf %102, %103 : vector<1x32x128xf32>
    %105 = math.sqrt %104 : vector<1x32x128xf32>
    %cst_45 = arith.constant 0.000000e+00 : f32
    %106 = vector.broadcast %cst_45 : f32 to vector<1x32x128xf32>
    %107 = arith.maximumf %96, %106 : vector<1x32x128xf32>
    %cst_46 = arith.constant 9.99999974E-5 : f32
    %108 = vector.broadcast %cst_46 : f32 to vector<1x32x128xf32>
    %109 = arith.addf %107, %108 : vector<1x32x128xf32>
    %110 = math.sqrt %109 : vector<1x32x128xf32>
    %cst_47 = arith.constant 9.99999974E-5 : f32
    %111 = vector.broadcast %cst_47 : f32 to vector<1x32x128xf32>
    %112 = arith.addf %105, %111 : vector<1x32x128xf32>
    %113 = tpu.reciprocal %112 : vector<1x32x128xf32> -> vector<1x32x128xf32>
    %cst_48 = arith.constant 9.99999974E-5 : f32
    %114 = vector.broadcast %cst_48 : f32 to vector<1x32x128xf32>
    %115 = arith.addf %110, %114 : vector<1x32x128xf32>
    %116 = tpu.reciprocal %115 : vector<1x32x128xf32> -> vector<1x32x128xf32>
    %117 = arith.mulf %113, %113 : vector<1x32x128xf32>
    %118 = arith.mulf %92, %117 : vector<1x32x128xf32>
    %119 = arith.mulf %116, %116 : vector<1x32x128xf32>
    %120 = arith.mulf %96, %119 : vector<1x32x128xf32>
    %121 = arith.addf %118, %120 : vector<1x32x128xf32>
    %cst_49 = arith.constant 2.000000e+00 : f32
    %122 = vector.broadcast %cst_49 : f32 to vector<1x32x128xf32>
    %123 = arith.mulf %122, %100 : vector<1x32x128xf32>
    %124 = arith.mulf %113, %116 : vector<1x32x128xf32>
    %125 = arith.mulf %123, %124 : vector<1x32x128xf32>
    %126 = arith.subf %121, %125 : vector<1x32x128xf32>
    %cst_50 = arith.constant 0.000000e+00 : f32
    %127 = vector.broadcast %cst_50 : f32 to vector<1x32x128xf32>
    %128 = arith.maximumf %126, %127 : vector<1x32x128xf32>
    %c0_51 = arith.constant 0 : index
    %c0_52 = arith.constant 0 : index
    %c0_53 = arith.constant 0 : index
    %129 = vector.load %arg2[%c0_51, %c0_52, %c0_53] : memref<1x32x128xf32, #tpu.memory_space<vmem>>, vector<1x32x128xf32>
    %130 = arith.mulf %128, %129 : vector<1x32x128xf32>
    %131 = vector.shape_cast %130 : vector<1x32x128xf32> to vector<1x1x32x128xf32>
    %cst_54 = arith.constant dense<0.000000e+00> : vector<1xf32>
    %132 = vector.multi_reduction <add>, %131, %cst_54 [1, 2, 3] : vector<1x1x32x128xf32> to vector<1xf32>
    %133 = vector.shape_cast %132 : vector<1xf32> to vector<1x1x1x1xf32>
    %134 = vector.extract %133[0, 0, 0, 0] : f32 from vector<1x1x1x1xf32>
    %135 = vector.broadcast %134 : f32 to vector<1x8x128xf32>
    %c0_55 = arith.constant 0 : index
    %c0_56 = arith.constant 0 : index
    %c0_57 = arith.constant 0 : index
    %136 = vector.load %arg5[%c0_55, %c0_56, %c0_57] : memref<1x8x128xf32, #tpu.memory_space<vmem>>, vector<1x8x128xf32>
    tpu.vector_store %arg5[%c0_55, %c0_56, %c0_57], %135 {strides = array<i32>} : memref<1x8x128xf32, #tpu.memory_space<vmem>>, vector<1x8x128xf32>,
    return
  }
  func.func @transform_0(%arg0: i32, %arg1: memref<3xi32, #tpu.memory_space<smem>>) -> (i32, i32, i32) {
    %0 = arith.index_cast %arg0 : i32 to index
    %1 = memref.load %arg1[%0] : memref<3xi32, #tpu.memory_space<smem>>
    %c0_i32 = arith.constant 0 : i32
    %c0_i32_0 = arith.constant 0 : i32
    %c0_i32_1 = arith.constant 0 : i32
    return %1, %c0_i32, %c0_i32_0 : i32, i32, i32
  }
  func.func @transform_1(%arg0: i32, %arg1: memref<3xi32, #tpu.memory_space<smem>>) -> (i32, i32, i32) {
    %c0_i32 = arith.constant 0 : i32
    %c0_i32_0 = arith.constant 0 : i32
    %c0_i32_1 = arith.constant 0 : i32
    return %arg0, %c0_i32, %c0_i32_0 : i32, i32, i32
  }
  func.func @transform_2(%arg0: i32, %arg1: memref<3xi32, #tpu.memory_space<smem>>) -> (i32, i32, i32) {
    %c0_i32 = arith.constant 0 : i32
    %c0_i32_0 = arith.constant 0 : i32
    %c0_i32_1 = arith.constant 0 : i32
    return %arg0, %c0_i32, %c0_i32_0 : i32, i32, i32
  }
  func.func @transform_3(%arg0: i32, %arg1: memref<3xi32, #tpu.memory_space<smem>>) -> (i32, i32, i32) {
    %c0_i32 = arith.constant 0 : i32
    %c0_i32_0 = arith.constant 0 : i32
    %c0_i32_1 = arith.constant 0 : i32
    return %arg0, %c0_i32, %c0_i32_0 : i32, i32, i32
  }
}

</mosaic_0001>

<llo_original>
// kernel: struct_loss_forward.1
$region0: #{struct_loss_forward.1}
  #allocation0 [shape = 'u32[]', space=smem, size = 0x4, offset = 0x4, fixed_abs, tag = 'smem constant byte address 0x4 - core index']
  #allocation1 [shape = 'u32[144,128]{1,0:T(1,128)}', space=vmem, size = 0x12000, scoped, tag = 'internal scratch']
  #allocation2 [shape = 's32[1]{0}', space=sflag, size = 0x4, scoped, tag = 'scoped memory for struct_loss_forward.1']
  #allocation3 [shape = 'u8[512]{0}', space=smem, size = 0x200, scoped, tag = 'prefetched SMEM operand 0']
  %s0 = inlined_call_operand.vmem [shape: s32[3], index: 0, kind: input, shape index: {}]
  %s1 = inlined_call_operand.vmem [shape: f32[3,32,128], index: 1, kind: input, shape index: {}]
  %s2 = inlined_call_operand.vmem [shape: f32[3,32,128], index: 2, kind: input, shape index: {}]
  %s3 = inlined_call_operand.vmem [shape: f32[3,32,128], index: 3, kind: input, shape index: {}]
  %s4 = inlined_call_operand.vmem [shape: f32[3,8,128], index: 4, kind: output, shape index: {}]
  %s5 = sld [smem:[#allocation0]]
  $region45: #{struct_loss_forward.1} parent=0
    _
  %s7 = ssub.s32 1, %s5
  %s8 = scalar_select 0, %s7, %s5
  %s9 = sshll.u32 %s0, 4
  %s10 = int_to_ptr.vmem [resolvable:$true] %s9
  %12 = dma.vmem_to_smem %s10, 16, [#allocation3], [#allocation2]
  %13 = dma.done [#allocation2], 16
  %14 = sfence
  loop: start=0, step=1, limit=5
  $region2: #{struct_loss_forward.1} parent=0 // loop_pre_header
    _
  $region3: #{struct_loss_forward.1} parent=0 // loop_header
    %s16 = sphi 0, %s20
    %p17 = scmp.ge.s32.totalorder %s16, 5
    %s28 = sphi 0, %s30
    %s31 = sphi 0, %s28
    %s32 = sphi 0, %s31
    %s48 = sphi 0, %s32
    %s54 = sphi 0, %s56
    %s57 = sphi 0, %s54
    %s58 = sphi 0, %s57
    %s74 = sphi 0, %s58
    %s80 = sphi 0, %s82
    %s83 = sphi 0, %s80
    %s84 = sphi 0, %s83
    %s100 = sphi 0, %s84
    %s106 = sphi 0, %s108
    %s109 = sphi 0, %s106
    %s110 = sphi 0, %s109
    %s126 = sphi 0, %s110
  $region4: #{struct_loss_forward.1} parent=0 // loop_header_branch
    %19 = sbr.rel (%p17) target = $region8
  $region5: #{struct_loss_forward.1} parent=0 // loop_body
    %s21 = ssub.s32 %s16, 1
    %s22 = ssub.s32 %s16, 2
    %s23 = sadd.s32 %s16, 1
    %s24 = sld [smem:[#allocation3 + %s16]]
    %s25 = sld [smem:[#allocation3 + %s23]]
    %s26 = ssub.s32 %s24, %s25
    %p27 = scmp.eq.s32.totalorder %s26, 0
    %s29 = sadd.s32 %s28, 1
    %s30 = scalar_select %p27, %s28, %s29
    %p33 = pneg %p27
    %p34 = scmp.eq.s32.totalorder %s16, 2
    %p35 = por %p33, %p34
    %p36 = scmp.ne.s32.totalorder %s28, %s31
    %p37 = scmp.eq.s32.totalorder %s16, 0
    %p38 = por %p36, %p37
    %p39 = scmp.ne.s32.totalorder %s28, %s31
    %p40 = scmp.eq.s32.totalorder %s21, 2
    %p41 = por %p39, %p40
    %p42 = scmp.ne.s32.totalorder %s31, %s32
    %p43 = scmp.eq.s32.totalorder %s21, 0
    %p44 = por %p42, %p43
    %p45 = scmp.ne.s32.totalorder %s31, %s32
    %p46 = scmp.eq.s32.totalorder %s22, 2
    %p47 = por %p45, %p46
    %p49 = scmp.ne.s32.totalorder %s32, %s48
    %p50 = scmp.eq.s32.totalorder %s22, 0
    %p51 = por %p49, %p50
    %s52 = ssub.s32 %s16, %s23
    %p53 = scmp.eq.s32.totalorder %s52, 0
    %s55 = sadd.s32 %s54, 1
    %s56 = scalar_select %p53, %s54, %s55
    %p59 = pneg %p53
    %p60 = scmp.eq.s32.totalorder %s16, 2
    %p61 = por %p59, %p60
    %p62 = scmp.ne.s32.totalorder %s54, %s57
    %p63 = scmp.eq.s32.totalorder %s16, 0
    %p64 = por %p62, %p63
    %p65 = scmp.ne.s32.totalorder %s54, %s57
    %p66 = scmp.eq.s32.totalorder %s21, 2
    %p67 = por %p65, %p66
    %p68 = scmp.ne.s32.totalorder %s57, %s58
    %p69 = scmp.eq.s32.totalorder %s21, 0
    %p70 = por %p68, %p69
    %p71 = scmp.ne.s32.totalorder %s57, %s58
    %p72 = scmp.eq.s32.totalorder %s22, 2
    %p73 = por %p71, %p72
    %p75 = scmp.ne.s32.totalorder %s58, %s74
    %p76 = scmp.eq.s32.totalorder %s22, 0
    %p77 = por %p75, %p76
    %s78 = ssub.s32 %s16, %s23
    %p79 = scmp.eq.s32.totalorder %s78, 0
    %s81 = sadd.s32 %s80, 1
    %s82 = scalar_select %p79, %s80, %s81
    %p85 = pneg %p79
    %p86 = scmp.eq.s32.totalorder %s16, 2
    %p87 = por %p85, %p86
    %p88 = scmp.ne.s32.totalorder %s80, %s83
    %p89 = scmp.eq.s32.totalorder %s16, 0
    %p90 = por %p88, %p89
    %p91 = scmp.ne.s32.totalorder %s80, %s83
    %p92 = scmp.eq.s32.totalorder %s21, 2
    %p93 = por %p91, %p92
    %p94 = scmp.ne.s32.totalorder %s83, %s84
    %p95 = scmp.eq.s32.totalorder %s21, 0
    %p96 = por %p94, %p95
    %p97 = scmp.ne.s32.totalorder %s83, %s84
    %p98 = scmp.eq.s32.totalorder %s22, 2
    %p99 = por %p97, %p98
    %p101 = scmp.ne.s32.totalorder %s84, %s100
    %p102 = scmp.eq.s32.totalorder %s22, 0
    %p103 = por %p101, %p102
    %s104 = ssub.s32 %s16, %s23
    %p105 = scmp.eq.s32.totalorder %s104, 0
    %s107 = sadd.s32 %s106, 1
    %s108 = scalar_select %p105, %s106, %s107
    %p111 = pneg %p105
    %p112 = scmp.eq.s32.totalorder %s16, 2
    %p113 = por %p111, %p112
    %p114 = scmp.ne.s32.totalorder %s106, %s109
    %p115 = scmp.eq.s32.totalorder %s16, 0
    %p116 = por %p114, %p115
    %p117 = scmp.ne.s32.totalorder %s106, %s109
    %p118 = scmp.eq.s32.totalorder %s21, 2
    %p119 = por %p117, %p118
    %p120 = scmp.ne.s32.totalorder %s109, %s110
    %p121 = scmp.eq.s32.totalorder %s21, 0
    %p122 = por %p120, %p121
    %p123 = scmp.ne.s32.totalorder %s109, %s110
    %p124 = scmp.eq.s32.totalorder %s22, 2
    %p125 = por %p123, %p124
    %p127 = scmp.ne.s32.totalorder %s110, %s126
    %p128 = scmp.eq.s32.totalorder %s22, 0
    %p129 = por %p127, %p128
    %p130 = scmp.le.s32.totalorder 1, %s16
    %p131 = scmp.lt.s32.totalorder %s16, 4
    %p132 = pnand %p130, %p131
    %p133 = pneg %p132
    // Predicated region
    $region9: #{struct_loss_forward.1} parent=5 // pred_check
      _
    $region10: #{struct_loss_forward.1} parent=5 // pred_check_branch
      %135 = sbr.rel (%p132) target = $region12
    $region11: #{struct_loss_forward.1} parent=5 // pred_region
      %s136 = ssub.s32 %s16, 1
    $region12: #{struct_loss_forward.1} parent=5 // pred_fallthru
      _
    %p137 = scmp.lt.s32.totalorder %s16, 3
    // Predicated region
    $region13: #{struct_loss_forward.1} parent=5 // pred_check
      %p138 = pneg %p137
    $region14: #{struct_loss_forward.1} parent=5 // pred_check_branch
      %140 = sbr.rel (%p138) target = $region16
    $region15: #{struct_loss_forward.1} parent=5 // pred_region
      // Predicated region
      $region17: #{struct_loss_forward.1} parent=15 // pred_check
        %p141 = pneg %p38
      $region18: #{struct_loss_forward.1} parent=15 // pred_check_branch
        %143 = sbr.rel (%p141) target = $region20
      $region19: #{struct_loss_forward.1} parent=15 // pred_region
        %s144 = sld [smem:[#allocation3 + %s16]]
        %p145 = scmp.lt.s32.totalorder %s144, 2
        %s146 = scalar_select %p145, %s144, 2
        %s147 = smul.addr %s146, 4
        %s148 = smul.addr %s147, 8
        %s149 = scalar_lea.vmem %s1, %s148
        %s150 = sld [smem:[#allocation3 + %s16]]
      $region20: #{struct_loss_forward.1} parent=15 // pred_fallthru
        _
      // Predicated region
      $region21: #{struct_loss_forward.1} parent=15 // pred_check
        %p151 = pneg %p64
      $region22: #{struct_loss_forward.1} parent=15 // pred_check_branch
        %153 = sbr.rel (%p151) target = $region24
      $region23: #{struct_loss_forward.1} parent=15 // pred_region
        %p154 = scmp.lt.s32.totalorder %s16, 2
        %s155 = scalar_select %p154, %s16, 2
        %s156 = smul.addr %s155, 4
        %s157 = smul.addr %s156, 8
        %s158 = scalar_lea.vmem %s2, %s157
      $region24: #{struct_loss_forward.1} parent=15 // pred_fallthru
        _
      // Predicated region
      $region25: #{struct_loss_forward.1} parent=15 // pred_check
        %p159 = pneg %p90
      $region26: #{struct_loss_forward.1} parent=15 // pred_check_branch
        %161 = sbr.rel (%p159) target = $region28
      $region27: #{struct_loss_forward.1} parent=15 // pred_region
        %p162 = scmp.lt.s32.totalorder %s16, 2
        %s163 = scalar_select %p162, %s16, 2
        %s164 = smul.addr %s163, 4
        %s165 = smul.addr %s164, 8
        %s166 = scalar_lea.vmem %s3, %s165
      $region28: #{struct_loss_forward.1} parent=15 // pred_fallthru
        _
    $region16: #{struct_loss_forward.1} parent=5 // pred_fallthru
      _
    %p167 = scmp.le.s32.totalorder 1, %s16
    %p168 = scmp.lt.s32.totalorder %s16, 4
    %p169 = pnand %p167, %p168
    %p170 = pneg %p169
    // Predicated region
    $region29: #{struct_loss_forward.1} parent=5 // pred_check
      _
    $region30: #{struct_loss_forward.1} parent=5 // pred_check_branch
      %172 = sbr.rel (%p169) target = $region32
    $region31: #{struct_loss_forward.1} parent=5 // pred_region
      %s173 = ssub.s32 %s16, 1
      %s174 = sld [smem:[#allocation3 + %s21]]
      %p175 = scmp.lt.s32.totalorder %s174, 2
      %s176 = scalar_select %p175, %s174, 2
      %s177 = smul.addr %s176, 4
      %s178 = smul.addr %s177, 8
      %s179 = scalar_lea.vmem %s1, %s178
      %p180 = pneg %p44
      %p181 = pneg %p41
      %p182 = scmp.lt.s32.totalorder %s21, 2
      %s183 = scalar_select %p182, %s21, 2
      %s184 = smul.addr %s183, 4
      %s185 = smul.addr %s184, 8
      %s186 = scalar_lea.vmem %s2, %s185
      %p187 = pneg %p70
      %p188 = pneg %p67
      %p189 = scmp.lt.s32.totalorder %s21, 2
      %s190 = scalar_select %p189, %s21, 2
      %s191 = smul.addr %s190, 4
      %s192 = smul.addr %s191, 8
      %s193 = scalar_lea.vmem %s3, %s192
      %p194 = pneg %p96
      %p195 = pneg %p93
      %p196 = pneg %p122
      %p197 = pneg %p119
      %p198 = scmp.lt.s32.totalorder %s21, 2
      %s199 = scalar_select %p198, %s21, 2
      %s200 = smul.addr %s199, 8
      %s201 = scalar_lea.vmem %s4, %s200
      %s202 = sld [smem:[#allocation3 + %s21]]
      %p203 = scmp.lt.s32.totalorder %s202, 2
      %s204 = scalar_select %p203, %s202, 2
      %s205 = smul.addr %s204, 4
      %s206 = smul.addr %s205, 8
      %s207 = scalar_lea.vmem %s1, %s206
      %s208 = sld [smem:[#allocation3 + %s21]]
      %p209 = scmp.lt.s32.totalorder %s21, 2
      %s210 = scalar_select %p209, %s21, 2
      %s211 = smul.addr %s210, 4
      %s212 = smul.addr %s211, 8
      %s213 = scalar_lea.vmem %s2, %s212
      %p214 = scmp.lt.s32.totalorder %s21, 2
      %s215 = scalar_select %p214, %s21, 2
      %s216 = smul.addr %s215, 4
      %s217 = smul.addr %s216, 8
      %s218 = scalar_lea.vmem %s3, %s217
      %p219 = scmp.lt.s32.totalorder %s21, 2
      %s220 = scalar_select %p219, %s21, 2
      %s221 = smul.addr %s220, 8
      %s222 = scalar_lea.vmem %s4, %s221
      %v223 = vld [vmem:[%s213] sm:$0xff]
      %v224 = vld [vmem:[%s213 + $0x8] sm:$0xff]
      %v225 = vld [vmem:[%s213 + $0x10] sm:$0xff]
      %v226 = vld [vmem:[%s213 + $0x18] sm:$0xff]
      %v227 = vld [vmem:[%s218] sm:$0xff]
      %v228 = vld [vmem:[%s218 + $0x8] sm:$0xff]
      %v229 = vld [vmem:[%s218 + $0x10] sm:$0xff]
      %v230 = vld [vmem:[%s218 + $0x18] sm:$0xff]
      %v231 = vmul.f32 %v223, %v223
      %v232 = vmul.f32 %v224, %v224
      %v233 = vmul.f32 %v225, %v225
      %v234 = vmul.f32 %v226, %v226
      %v235 = vmul.f32 %v227, %v227
      %v236 = vmul.f32 %v228, %v228
      %v237 = vmul.f32 %v229, %v229
      %v238 = vmul.f32 %v230, %v230
      %v239 = vmul.f32 %v223, %v227
      %v240 = vmul.f32 %v224, %v228
      %v241 = vmul.f32 %v225, %v229
      %v242 = vmul.f32 %v226, %v230
      %243 = vrot.lane.b32.xlu0 %v223, 2
      %v244 = vpop.permute.xlu0 %243
      %245 = vrot.lane.b32.xlu0 %v224, 2
      %v246 = vpop.permute.xlu0 %245
      %247 = vrot.lane.b32.xlu0 %v225, 2
      %v248 = vpop.permute.xlu0 %247
      %249 = vrot.lane.b32.xlu0 %v226, 2
      %v250 = vpop.permute.xlu0 %249
      %v251 = vadd.f32 %v223, %v244
      %v252 = vadd.f32 %v224, %v246
      %v253 = vadd.f32 %v225, %v248
      %v254 = vadd.f32 %v226, %v250
      %255 = vrot.lane.b32.xlu0 %v227, 2
      %v256 = vpop.permute.xlu0 %255
      %257 = vrot.lane.b32.xlu0 %v228, 2
      %v258 = vpop.permute.xlu0 %257
      %259 = vrot.lane.b32.xlu0 %v229, 2
      %v260 = vpop.permute.xlu0 %259
      %261 = vrot.lane.b32.xlu0 %v230, 2
      %v262 = vpop.permute.xlu0 %261
      %v263 = vadd.f32 %v227, %v256
      %v264 = vadd.f32 %v228, %v258
      %v265 = vadd.f32 %v229, %v260
      %v266 = vadd.f32 %v230, %v262
      %267 = vrot.lane.b32.xlu0 %v231, 2
      %v268 = vpop.permute.xlu0 %267
      %269 = vrot.lane.b32.xlu0 %v232, 2
      %v270 = vpop.permute.xlu0 %269
      %271 = vrot.lane.b32.xlu0 %v233, 2
      %v272 = vpop.permute.xlu0 %271
      %273 = vrot.lane.b32.xlu0 %v234, 2
      %v274 = vpop.permute.xlu0 %273
      %v275 = vadd.f32 %v231, %v268
      %v276 = vadd.f32 %v232, %v270
      %v277 = vadd.f32 %v233, %v272
      %v278 = vadd.f32 %v234, %v274
      %279 = vrot.lane.b32.xlu0 %v235, 2
      %v280 = vpop.permute.xlu0 %279
      %281 = vrot.lane.b32.xlu0 %v236, 2
      %v282 = vpop.permute.xlu0 %281
      %283 = vrot.lane.b32.xlu0 %v237, 2
      %v284 = vpop.permute.xlu0 %283
      %285 = vrot.lane.b32.xlu0 %v238, 2
      %v286 = vpop.permute.xlu0 %285
      %v287 = vadd.f32 %v235, %v280
      %v288 = vadd.f32 %v236, %v282
      %v289 = vadd.f32 %v237, %v284
      %v290 = vadd.f32 %v238, %v286
      %291 = vrot.lane.b32.xlu0 %v239, 2
      %v292 = vpop.permute.xlu0 %291
      %293 = vrot.lane.b32.xlu0 %v240, 2
      %v294 = vpop.permute.xlu0 %293
      %295 = vrot.lane.b32.xlu0 %v241, 2
      %v296 = vpop.permute.xlu0 %295
      %297 = vrot.lane.b32.xlu0 %v242, 2
      %v298 = vpop.permute.xlu0 %297
      %v299 = vadd.f32 %v239, %v292
      %v300 = vadd.f32 %v240, %v294
      %v301 = vadd.f32 %v241, %v296
      %v302 = vadd.f32 %v242, %v298
      %303 = vrot.lane.b32.xlu0 %v223, 1
      %v304 = vpop.permute.xlu0 %303
      %305 = vrot.lane.b32.xlu0 %v224, 1
      %v306 = vpop.permute.xlu0 %305
      %307 = vrot.lane.b32.xlu0 %v225, 1
      %v308 = vpop.permute.xlu0 %307
      %309 = vrot.lane.b32.xlu0 %v226, 1
      %v310 = vpop.permute.xlu0 %309
      %v311 = vadd.f32 %v251, %v304
      %v312 = vadd.f32 %v252, %v306
      %v313 = vadd.f32 %v253, %v308
      %v314 = vadd.f32 %v254, %v310
      %315 = vrot.lane.b32.xlu0 %v227, 1
      %v316 = vpop.permute.xlu0 %315
      %317 = vrot.lane.b32.xlu0 %v228, 1
      %v318 = vpop.permute.xlu0 %317
      %319 = vrot.lane.b32.xlu0 %v229, 1
      %v320 = vpop.permute.xlu0 %319
      %321 = vrot.lane.b32.xlu0 %v230, 1
      %v322 = vpop.permute.xlu0 %321
      %v323 = vadd.f32 %v263, %v316
      %v324 = vadd.f32 %v264, %v318
      %v325 = vadd.f32 %v265, %v320
      %v326 = vadd.f32 %v266, %v322
      %327 = vrot.lane.b32.xlu0 %v231, 1
      %v328 = vpop.permute.xlu0 %327
      %329 = vrot.lane.b32.xlu0 %v232, 1
      %v330 = vpop.permute.xlu0 %329
      %331 = vrot.lane.b32.xlu0 %v233, 1
      %v332 = vpop.permute.xlu0 %331
      %333 = vrot.lane.b32.xlu0 %v234, 1
      %v334 = vpop.permute.xlu0 %333
      %v335 = vadd.f32 %v275, %v328
      %v336 = vadd.f32 %v276, %v330
      %v337 = vadd.f32 %v277, %v332
      %v338 = vadd.f32 %v278, %v334
      %339 = vrot.lane.b32.xlu0 %v235, 1
      %v340 = vpop.permute.xlu0 %339
      %341 = vrot.lane.b32.xlu0 %v236, 1
      %v342 = vpop.permute.xlu0 %341
      %343 = vrot.lane.b32.xlu0 %v237, 1
      %v344 = vpop.permute.xlu0 %343
      %345 = vrot.lane.b32.xlu0 %v238, 1
      %v346 = vpop.permute.xlu0 %345
      %v347 = vadd.f32 %v287, %v340
      %v348 = vadd.f32 %v288, %v342
      %v349 = vadd.f32 %v289, %v344
      %v350 = vadd.f32 %v290, %v346
      %351 = vrot.lane.b32.xlu0 %v239, 1
      %v352 = vpop.permute.xlu0 %351
      %353 = vrot.lane.b32.xlu0 %v240, 1
      %v354 = vpop.permute.xlu0 %353
      %355 = vrot.lane.b32.xlu0 %v241, 1
      %v356 = vpop.permute.xlu0 %355
      %357 = vrot.lane.b32.xlu0 %v242, 1
      %v358 = vpop.permute.xlu0 %357
      %v359 = vadd.f32 %v299, %v352
      %v360 = vadd.f32 %v300, %v354
      %v361 = vadd.f32 %v301, %v356
      %v362 = vadd.f32 %v302, %v358
      %363 = vrot.lane.b32.xlu0 %v223, 127
      %v364 = vpop.permute.xlu0 %363
      %365 = vrot.lane.b32.xlu0 %v224, 127
      %v366 = vpop.permute.xlu0 %365
      %367 = vrot.lane.b32.xlu0 %v225, 127
      %v368 = vpop.permute.xlu0 %367
      %369 = vrot.lane.b32.xlu0 %v226, 127
      %v370 = vpop.permute.xlu0 %369
      %v371 = vadd.f32 %v311, %v364
      %v372 = vadd.f32 %v312, %v366
      %v373 = vadd.f32 %v313, %v368
      %v374 = vadd.f32 %v314, %v370
      %375 = vrot.lane.b32.xlu0 %v227, 127
      %v376 = vpop.permute.xlu0 %375
      %377 = vrot.lane.b32.xlu0 %v228, 127
      %v378 = vpop.permute.xlu0 %377
      %379 = vrot.lane.b32.xlu0 %v229, 127
      %v380 = vpop.permute.xlu0 %379
      %381 = vrot.lane.b32.xlu0 %v230, 127
      %v382 = vpop.permute.xlu0 %381
      %v383 = vadd.f32 %v323, %v376
      %v384 = vadd.f32 %v324, %v378
      %v385 = vadd.f32 %v325, %v380
      %v386 = vadd.f32 %v326, %v382
      %387 = vrot.lane.b32.xlu0 %v231, 127
      %v388 = vpop.permute.xlu0 %387
      %389 = vrot.lane.b32.xlu0 %v232, 127
      %v390 = vpop.permute.xlu0 %389
      %391 = vrot.lane.b32.xlu0 %v233, 127
      %v392 = vpop.permute.xlu0 %391
      %393 = vrot.lane.b32.xlu0 %v234, 127
      %v394 = vpop.permute.xlu0 %393
      %v395 = vadd.f32 %v335, %v388
      %v396 = vadd.f32 %v336, %v390
      %v397 = vadd.f32 %v337, %v392
      %v398 = vadd.f32 %v338, %v394
      %399 = vrot.lane.b32.xlu0 %v235, 127
      %v400 = vpop.permute.xlu0 %399
      %401 = vrot.lane.b32.xlu0 %v236, 127
      %v402 = vpop.permute.xlu0 %401
      %403 = vrot.lane.b32.xlu0 %v237, 127
      %v404 = vpop.permute.xlu0 %403
      %405 = vrot.lane.b32.xlu0 %v238, 127
      %v406 = vpop.permute.xlu0 %405
      %v407 = vadd.f32 %v347, %v400
      %v408 = vadd.f32 %v348, %v402
      %v409 = vadd.f32 %v349, %v404
      %v410 = vadd.f32 %v350, %v406
      %411 = vrot.lane.b32.xlu0 %v239, 127
      %v412 = vpop.permute.xlu0 %411
      %413 = vrot.lane.b32.xlu0 %v240, 127
      %v414 = vpop.permute.xlu0 %413
      %415 = vrot.lane.b32.xlu0 %v241, 127
      %v416 = vpop.permute.xlu0 %415
      %417 = vrot.lane.b32.xlu0 %v242, 127
      %v418 = vpop.permute.xlu0 %417
      %v419 = vadd.f32 %v359, %v412
      %v420 = vadd.f32 %v360, %v414
      %v421 = vadd.f32 %v361, %v416
      %v422 = vadd.f32 %v362, %v418
      %423 = vrot.lane.b32.xlu0 %v223, 126
      %v424 = vpop.permute.xlu0 %423
      %425 = vrot.lane.b32.xlu0 %v224, 126
      %v426 = vpop.permute.xlu0 %425
      %427 = vrot.lane.b32.xlu0 %v225, 126
      %v428 = vpop.permute.xlu0 %427
      %429 = vrot.lane.b32.xlu0 %v226, 126
      %v430 = vpop.permute.xlu0 %429
      %v431 = vadd.f32 %v371, %v424
      %v432 = vadd.f32 %v372, %v426
      %v433 = vadd.f32 %v373, %v428
      %v434 = vadd.f32 %v374, %v430
      %435 = vrot.lane.b32.xlu0 %v227, 126
      %v436 = vpop.permute.xlu0 %435
      %437 = vrot.lane.b32.xlu0 %v228, 126
      %v438 = vpop.permute.xlu0 %437
      %439 = vrot.lane.b32.xlu0 %v229, 126
      %v440 = vpop.permute.xlu0 %439
      %441 = vrot.lane.b32.xlu0 %v230, 126
      %v442 = vpop.permute.xlu0 %441
      %v443 = vadd.f32 %v383, %v436
      %v444 = vadd.f32 %v384, %v438
      %v445 = vadd.f32 %v385, %v440
      %v446 = vadd.f32 %v386, %v442
      %447 = vrot.lane.b32.xlu0 %v231, 126
      %v448 = vpop.permute.xlu0 %447
      %449 = vrot.lane.b32.xlu0 %v232, 126
      %v450 = vpop.permute.xlu0 %449
      %451 = vrot.lane.b32.xlu0 %v233, 126
      %v452 = vpop.permute.xlu0 %451
      %453 = vrot.lane.b32.xlu0 %v234, 126
      %v454 = vpop.permute.xlu0 %453
      %v455 = vadd.f32 %v395, %v448
      %v456 = vadd.f32 %v396, %v450
      %v457 = vadd.f32 %v397, %v452
      %v458 = vadd.f32 %v398, %v454
      %459 = vrot.lane.b32.xlu0 %v235, 126
      %v460 = vpop.permute.xlu0 %459
      %461 = vrot.lane.b32.xlu0 %v236, 126
      %v462 = vpop.permute.xlu0 %461
      %463 = vrot.lane.b32.xlu0 %v237, 126
      %v464 = vpop.permute.xlu0 %463
      %465 = vrot.lane.b32.xlu0 %v238, 126
      %v466 = vpop.permute.xlu0 %465
      %v467 = vadd.f32 %v407, %v460
      %v468 = vadd.f32 %v408, %v462
      %v469 = vadd.f32 %v409, %v464
      %v470 = vadd.f32 %v410, %v466
      %471 = vrot.lane.b32.xlu0 %v239, 126
      %v472 = vpop.permute.xlu0 %471
      %473 = vrot.lane.b32.xlu0 %v240, 126
      %v474 = vpop.permute.xlu0 %473
      %475 = vrot.lane.b32.xlu0 %v241, 126
      %v476 = vpop.permute.xlu0 %475
      %477 = vrot.lane.b32.xlu0 %v242, 126
      %v478 = vpop.permute.xlu0 %477
      %v479 = vadd.f32 %v419, %v472
      %v480 = vadd.f32 %v420, %v474
      %v481 = vadd.f32 %v421, %v476
      %v482 = vadd.f32 %v422, %v478
      %v483 = vrot.slane %v431, 6
      %v484 = vrot.slane %v432, 6
      %v485 = vrot.slane %v433, 6
      %v486 = vrot.slane %v434, 6
      %v487 = vlaneseq
      %v488 = vshrl.u32 %v487, 7
      %vm489 = vcmp.lt.s32.totalorder %v488, 2
      %v490 = vsel %vm489, %v485, %v486
      %v491 = vsel %vm489, %v484, %v485
      %v492 = vsel %vm489, %v483, %v484
      %v493 = vsel %vm489, %v486, %v483
      %v494 = vadd.f32 %v431, %v493
      %v495 = vadd.f32 %v432, %v492
      %v496 = vadd.f32 %v433, %v491
      %v497 = vadd.f32 %v434, %v490
      %v498 = vrot.slane %v443, 6
      %v499 = vrot.slane %v444, 6
      %v500 = vrot.slane %v445, 6
      %v501 = vrot.slane %v446, 6
      %v502 = vsel %vm489, %v500, %v501
      %v503 = vsel %vm489, %v499, %v500
      %v504 = vsel %vm489, %v498, %v499
      %v505 = vsel %vm489, %v501, %v498
      %v506 = vadd.f32 %v443, %v505
      %v507 = vadd.f32 %v444, %v504
      %v508 = vadd.f32 %v445, %v503
      %v509 = vadd.f32 %v446, %v502
      %v510 = vrot.slane %v455, 6
      %v511 = vrot.slane %v456, 6
      %v512 = vrot.slane %v457, 6
      %v513 = vrot.slane %v458, 6
      %v514 = vsel %vm489, %v512, %v513
      %v515 = vsel %vm489, %v511, %v512
      %v516 = vsel %vm489, %v510, %v511
      %v517 = vsel %vm489, %v513, %v510
      %v518 = vadd.f32 %v455, %v517
      %v519 = vadd.f32 %v456, %v516
      %v520 = vadd.f32 %v457, %v515
      %v521 = vadd.f32 %v458, %v514
      %v522 = vrot.slane %v467, 6
      %v523 = vrot.slane %v468, 6
      %v524 = vrot.slane %v469, 6
      %v525 = vrot.slane %v470, 6
      %v526 = vsel %vm489, %v524, %v525
      %v527 = vsel %vm489, %v523, %v524
      %v528 = vsel %vm489, %v522, %v523
      %v529 = vsel %vm489, %v525, %v522
      %v530 = vadd.f32 %v467, %v529
      %v531 = vadd.f32 %v468, %v528
      %v532 = vadd.f32 %v469, %v527
      %v533 = vadd.f32 %v470, %v526
      %v534 = vrot.slane %v479, 6
      %v535 = vrot.slane %v480, 6
      %v536 = vrot.slane %v481, 6
      %v537 = vrot.slane %v482, 6
      %v538 = vsel %vm489, %v536, %v537
      %v539 = vsel %vm489, %v535, %v536
      %v540 = vsel %vm489, %v534, %v535
      %v541 = vsel %vm489, %v537, %v534
      %v542 = vadd.f32 %v479, %v541
      %v543 = vadd.f32 %v480, %v540
      %v544 = vadd.f32 %v481, %v539
      %v545 = vadd.f32 %v482, %v538
      %v546 = vrot.slane %v431, 7
      %v547 = vrot.slane %v432, 7
      %v548 = vrot.slane %v433, 7
      %v549 = vrot.slane %v434, 7
      %vm550 = vcmp.lt.s32.totalorder %v488, 1
      %v551 = vsel %vm550, %v548, %v549
      %v552 = vsel %vm550, %v547, %v548
      %v553 = vsel %vm550, %v546, %v547
      %v554 = vsel %vm550, %v549, %v546
      %v555 = vadd.f32 %v494, %v554
      %v556 = vadd.f32 %v495, %v553
      %v557 = vadd.f32 %v496, %v552
      %v558 = vadd.f32 %v497, %v551
      %v559 = vrot.slane %v443, 7
      %v560 = vrot.slane %v444, 7
      %v561 = vrot.slane %v445, 7
      %v562 = vrot.slane %v446, 7
      %v563 = vsel %vm550, %v561, %v562
      %v564 = vsel %vm550, %v560, %v561
      %v565 = vsel %vm550, %v559, %v560
      %v566 = vsel %vm550, %v562, %v559
      %v567 = vadd.f32 %v506, %v566
      %v568 = vadd.f32 %v507, %v565
      %v569 = vadd.f32 %v508, %v564
      %v570 = vadd.f32 %v509, %v563
      %v571 = vrot.slane %v455, 7
      %v572 = vrot.slane %v456, 7
      %v573 = vrot.slane %v457, 7
      %v574 = vrot.slane %v458, 7
      %v575 = vsel %vm550, %v573, %v574
      %v576 = vsel %vm550, %v572, %v573
      %v577 = vsel %vm550, %v571, %v572
      %v578 = vsel %vm550, %v574, %v571
      %v579 = vadd.f32 %v518, %v578
      %v580 = vadd.f32 %v519, %v577
      %v581 = vadd.f32 %v520, %v576
      %v582 = vadd.f32 %v521, %v575
      %v583 = vrot.slane %v467, 7
      %v584 = vrot.slane %v468, 7
      %v585 = vrot.slane %v469, 7
      %v586 = vrot.slane %v470, 7
      %v587 = vsel %vm550, %v585, %v586
      %v588 = vsel %vm550, %v584, %v585
      %v589 = vsel %vm550, %v583, %v584
      %v590 = vsel %vm550, %v586, %v583
      %v591 = vadd.f32 %v530, %v590
      %v592 = vadd.f32 %v531, %v589
      %v593 = vadd.f32 %v532, %v588
      %v594 = vadd.f32 %v533, %v587
      %v595 = vrot.slane %v479, 7
      %v596 = vrot.slane %v480, 7
      %v597 = vrot.slane %v481, 7
      %v598 = vrot.slane %v482, 7
      %v599 = vsel %vm550, %v597, %v598
      %v600 = vsel %vm550, %v596, %v597
      %v601 = vsel %vm550, %v595, %v596
      %v602 = vsel %vm550, %v598, %v595
      %v603 = vadd.f32 %v542, %v602
      %v604 = vadd.f32 %v543, %v601
      %v605 = vadd.f32 %v544, %v600
      %v606 = vadd.f32 %v545, %v599
      %v607 = vrot.slane %v431, 1
      %v608 = vrot.slane %v432, 1
      %v609 = vrot.slane %v433, 1
      %v610 = vrot.slane %v434, 1
      %vm611 = vcmp.lt.s32.totalorder %v488, 7
      %v612 = vsel %vm611, %v609, %v610
      %v613 = vsel %vm611, %v608, %v609
      %v614 = vsel %vm611, %v607, %v608
      %v615 = vsel %vm611, %v610, %v607
      %v616 = vadd.f32 %v555, %v614
      %v617 = vadd.f32 %v556, %v613
      %v618 = vadd.f32 %v557, %v612
      %v619 = vadd.f32 %v558, %v615
      %v620 = vrot.slane %v443, 1
      %v621 = vrot.slane %v444, 1
      %v622 = vrot.slane %v445, 1
      %v623 = vrot.slane %v446, 1
      %v624 = vsel %vm611, %v622, %v623
      %v625 = vsel %vm611, %v621, %v622
      %v626 = vsel %vm611, %v620, %v621
      %v627 = vsel %vm611, %v623, %v620
      %v628 = vadd.f32 %v567, %v626
      %v629 = vadd.f32 %v568, %v625
      %v630 = vadd.f32 %v569, %v624
      %v631 = vadd.f32 %v570, %v627
      %v632 = vrot.slane %v455, 1
      %v633 = vrot.slane %v456, 1
      %v634 = vrot.slane %v457, 1
      %v635 = vrot.slane %v458, 1
      %v636 = vsel %vm611, %v634, %v635
      %v637 = vsel %vm611, %v633, %v634
      %v638 = vsel %vm611, %v632, %v633
      %v639 = vsel %vm611, %v635, %v632
      %v640 = vadd.f32 %v579, %v638
      %v641 = vadd.f32 %v580, %v637
      %v642 = vadd.f32 %v581, %v636
      %v643 = vadd.f32 %v582, %v639
      %v644 = vrot.slane %v467, 1
      %v645 = vrot.slane %v468, 1
      %v646 = vrot.slane %v469, 1
      %v647 = vrot.slane %v470, 1
      %v648 = vsel %vm611, %v646, %v647
      %v649 = vsel %vm611, %v645, %v646
      %v650 = vsel %vm611, %v644, %v645
      %v651 = vsel %vm611, %v647, %v644
      %v652 = vadd.f32 %v591, %v650
      %v653 = vadd.f32 %v592, %v649
      %v654 = vadd.f32 %v593, %v648
      %v655 = vadd.f32 %v594, %v651
      %v656 = vrot.slane %v479, 1
      %v657 = vrot.slane %v480, 1
      %v658 = vrot.slane %v481, 1
      %v659 = vrot.slane %v482, 1
      %v660 = vsel %vm611, %v658, %v659
      %v661 = vsel %vm611, %v657, %v658
      %v662 = vsel %vm611, %v656, %v657
      %v663 = vsel %vm611, %v659, %v656
      %v664 = vadd.f32 %v603, %v662
      %v665 = vadd.f32 %v604, %v661
      %v666 = vadd.f32 %v605, %v660
      %v667 = vadd.f32 %v606, %v663
      %v668 = vrot.slane %v431, 2
      %v669 = vrot.slane %v432, 2
      %v670 = vrot.slane %v433, 2
      %v671 = vrot.slane %v434, 2
      %vm672 = vcmp.lt.s32.totalorder %v488, 6
      %v673 = vsel %vm672, %v670, %v671
      %v674 = vsel %vm672, %v669, %v670
      %v675 = vsel %vm672, %v668, %v669
      %v676 = vsel %vm672, %v671, %v668
      %v677 = vadd.f32 %v616, %v675
      %v678 = vadd.f32 %v617, %v674
      %v679 = vadd.f32 %v618, %v673
      %v680 = vadd.f32 %v619, %v676
      %v681 = vrot.slane %v443, 2
      %v682 = vrot.slane %v444, 2
      %v683 = vrot.slane %v445, 2
      %v684 = vrot.slane %v446, 2
      %v685 = vsel %vm672, %v683, %v684
      %v686 = vsel %vm672, %v682, %v683
      %v687 = vsel %vm672, %v681, %v682
      %v688 = vsel %vm672, %v684, %v681
      %v689 = vadd.f32 %v628, %v687
      %v690 = vadd.f32 %v629, %v686
      %v691 = vadd.f32 %v630, %v685
      %v692 = vadd.f32 %v631, %v688
      %v693 = vrot.slane %v455, 2
      %v694 = vrot.slane %v456, 2
      %v695 = vrot.slane %v457, 2
      %v696 = vrot.slane %v458, 2
      %v697 = vsel %vm672, %v695, %v696
      %v698 = vsel %vm672, %v694, %v695
      %v699 = vsel %vm672, %v693, %v694
      %v700 = vsel %vm672, %v696, %v693
      %v701 = vadd.f32 %v640, %v699
      %v702 = vadd.f32 %v641, %v698
      %v703 = vadd.f32 %v642, %v697
      %v704 = vadd.f32 %v643, %v700
      %v705 = vrot.slane %v467, 2
      %v706 = vrot.slane %v468, 2
      %v707 = vrot.slane %v469, 2
      %v708 = vrot.slane %v470, 2
      %v709 = vsel %vm672, %v707, %v708
      %v710 = vsel %vm672, %v706, %v707
      %v711 = vsel %vm672, %v705, %v706
      %v712 = vsel %vm672, %v708, %v705
      %v713 = vadd.f32 %v652, %v711
      %v714 = vadd.f32 %v653, %v710
      %v715 = vadd.f32 %v654, %v709
      %v716 = vadd.f32 %v655, %v712
      %v717 = vrot.slane %v479, 2
      %v718 = vrot.slane %v480, 2
      %v719 = vrot.slane %v481, 2
      %v720 = vrot.slane %v482, 2
      %v721 = vsel %vm672, %v719, %v720
      %v722 = vsel %vm672, %v718, %v719
      %v723 = vsel %vm672, %v717, %v718
      %v724 = vsel %vm672, %v720, %v717
      %v725 = vadd.f32 %v664, %v723
      %v726 = vadd.f32 %v665, %v722
      %v727 = vadd.f32 %v666, %v721
      %v728 = vadd.f32 %v667, %v724
      %v729 = vmul.f32 %v677, 0.04
      %v730 = vmul.f32 %v678, 0.04
      %v731 = vmul.f32 %v679, 0.04
      %v732 = vmul.f32 %v680, 0.04
      %v733 = vmul.f32 %v689, 0.04
      %v734 = vmul.f32 %v690, 0.04
      %v735 = vmul.f32 %v691, 0.04
      %v736 = vmul.f32 %v692, 0.04
      %v737 = vmul.f32 %v701, 0.04
      %v738 = vmul.f32 %v702, 0.04
      %v739 = vmul.f32 %v703, 0.04
      %v740 = vmul.f32 %v704, 0.04
      %v741 = vmul.f32 %v729, %v729
      %v742 = vmul.f32 %v730, %v730
      %v743 = vmul.f32 %v731, %v731
      %v744 = vmul.f32 %v732, %v732
      %v745 = vsub.f32 %v737, %v741
      %v746 = vsub.f32 %v738, %v742
      %v747 = vsub.f32 %v739, %v743
      %v748 = vsub.f32 %v740, %v744
      %v749 = vmul.f32 %v713, 0.04
      %v750 = vmul.f32 %v714, 0.04
      %v751 = vmul.f32 %v715, 0.04
      %v752 = vmul.f32 %v716, 0.04
      %v753 = vmul.f32 %v733, %v733
      %v754 = vmul.f32 %v734, %v734
      %v755 = vmul.f32 %v735, %v735
      %v756 = vmul.f32 %v736, %v736
      %v757 = vsub.f32 %v749, %v753
      %v758 = vsub.f32 %v750, %v754
      %v759 = vsub.f32 %v751, %v755
      %v760 = vsub.f32 %v752, %v756
      %v761 = vmul.f32 %v725, 0.04
      %v762 = vmul.f32 %v726, 0.04
      %v763 = vmul.f32 %v727, 0.04
      %v764 = vmul.f32 %v728, 0.04
      %v765 = vmul.f32 %v729, %v733
      %v766 = vmul.f32 %v730, %v734
      %v767 = vmul.f32 %v731, %v735
      %v768 = vmul.f32 %v732, %v736
      %v769 = vsub.f32 %v761, %v765
      %v770 = vsub.f32 %v762, %v766
      %v771 = vsub.f32 %v763, %v767
      %v772 = vsub.f32 %v764, %v768
      %v773 = vmax.f32 %v745, 0.0
      %v774 = vmax.f32 %v746, 0.0
      %v775 = vmax.f32 %v747, 0.0
      %v776 = vmax.f32 %v748, 0.0
      %v777 = vadd.f32 %v773, 0.0001
      %v778 = vadd.f32 %v774, 0.0001
      %v779 = vadd.f32 %v775, 0.0001
      %v780 = vadd.f32 %v776, 0.0001
      %v781 = vrsqrt.pop %v777
      %v782 = vmul.f32 %v777, %v781
      %vm783 = vcmp.eq.f32.partialorder %v777, inf
      %v784 = vsel %vm783, %v777, %v782
      %vm785 = vcmp.eq.f32.partialorder %v777, 0.0
      %v786 = vand.u32 %v777, 2147483648
      %v787 = vsel %vm785, %v786, %v784
      %v788 = vrsqrt.pop %v778
      %v789 = vmul.f32 %v778, %v788
      %vm790 = vcmp.eq.f32.partialorder %v778, inf
      %v791 = vsel %vm790, %v778, %v789
      %vm792 = vcmp.eq.f32.partialorder %v778, 0.0
      %v793 = vand.u32 %v778, 2147483648
      %v794 = vsel %vm792, %v793, %v791
      %v795 = vrsqrt.pop %v779
      %v796 = vmul.f32 %v779, %v795
      %vm797 = vcmp.eq.f32.partialorder %v779, inf
      %v798 = vsel %vm797, %v779, %v796
      %vm799 = vcmp.eq.f32.partialorder %v779, 0.0
      %v800 = vand.u32 %v779, 2147483648
      %v801 = vsel %vm799, %v800, %v798
      %v802 = vrsqrt.pop %v780
      %v803 = vmul.f32 %v780, %v802
      %vm804 = vcmp.eq.f32.partialorder %v780, inf
      %v805 = vsel %vm804, %v780, %v803
      %vm806 = vcmp.eq.f32.partialorder %v780, 0.0
      %v807 = vand.u32 %v780, 2147483648
      %v808 = vsel %vm806, %v807, %v805
      %v809 = vmax.f32 %v757, 0.0
      %v810 = vmax.f32 %v758, 0.0
      %v811 = vmax.f32 %v759, 0.0
      %v812 = vmax.f32 %v760, 0.0
      %v813 = vadd.f32 %v809, 0.0001
      %v814 = vadd.f32 %v810, 0.0001
      %v815 = vadd.f32 %v811, 0.0001
      %v816 = vadd.f32 %v812, 0.0001
      %v817 = vrsqrt.pop %v813
      %v818 = vmul.f32 %v813, %v817
      %vm819 = vcmp.eq.f32.partialorder %v813, inf
      %v820 = vsel %vm819, %v813, %v818
      %vm821 = vcmp.eq.f32.partialorder %v813, 0.0
      %v822 = vand.u32 %v813, 2147483648
      %v823 = vsel %vm821, %v822, %v820
      %v824 = vrsqrt.pop %v814
      %v825 = vmul.f32 %v814, %v824
      %vm826 = vcmp.eq.f32.partialorder %v814, inf
      %v827 = vsel %vm826, %v814, %v825
      %vm828 = vcmp.eq.f32.partialorder %v814, 0.0
      %v829 = vand.u32 %v814, 2147483648
      %v830 = vsel %vm828, %v829, %v827
      %v831 = vrsqrt.pop %v815
      %v832 = vmul.f32 %v815, %v831
      %vm833 = vcmp.eq.f32.partialorder %v815, inf
      %v834 = vsel %vm833, %v815, %v832
      %vm835 = vcmp.eq.f32.partialorder %v815, 0.0
      %v836 = vand.u32 %v815, 2147483648
      %v837 = vsel %vm835, %v836, %v834
      %v838 = vrsqrt.pop %v816
      %v839 = vmul.f32 %v816, %v838
      %vm840 = vcmp.eq.f32.partialorder %v816, inf
      %v841 = vsel %vm840, %v816, %v839
      %vm842 = vcmp.eq.f32.partialorder %v816, 0.0
      %v843 = vand.u32 %v816, 2147483648
      %v844 = vsel %vm842, %v843, %v841
      %v845 = vadd.f32 %v787, 0.0001
      %v846 = vadd.f32 %v794, 0.0001
      %v847 = vadd.f32 %v801, 0.0001
      %v848 = vadd.f32 %v808, 0.0001
      %v849 = vrcp.pop %v845
      %v850 = vrcp.pop %v846
      %v851 = vrcp.pop %v847
      %v852 = vrcp.pop %v848
      %v853 = vadd.f32 %v823, 0.0001
      %v854 = vadd.f32 %v830, 0.0001
      %v855 = vadd.f32 %v837, 0.0001
      %v856 = vadd.f32 %v844, 0.0001
      %v857 = vrcp.pop %v853
      %v858 = vrcp.pop %v854
      %v859 = vrcp.pop %v855
      %v860 = vrcp.pop %v856
      %v861 = vmul.f32 %v849, %v849
      %v862 = vmul.f32 %v850, %v850
      %v863 = vmul.f32 %v851, %v851
      %v864 = vmul.f32 %v852, %v852
      %v865 = vmul.f32 %v745, %v861
      %v866 = vmul.f32 %v746, %v862
      %v867 = vmul.f32 %v747, %v863
      %v868 = vmul.f32 %v748, %v864
      %v869 = vmul.f32 %v857, %v857
      %v870 = vmul.f32 %v858, %v858
      %v871 = vmul.f32 %v859, %v859
      %v872 = vmul.f32 %v860, %v860
      %v873 = vmul.f32 %v757, %v869
      %v874 = vmul.f32 %v758, %v870
      %v875 = vmul.f32 %v759, %v871
      %v876 = vmul.f32 %v760, %v872
      %v877 = vadd.f32 %v865, %v873
      %v878 = vadd.f32 %v866, %v874
      %v879 = vadd.f32 %v867, %v875
      %v880 = vadd.f32 %v868, %v876
      %v881 = vmul.f32 %v769, 2.0
      %v882 = vmul.f32 %v770, 2.0
      %v883 = vmul.f32 %v771, 2.0
      %v884 = vmul.f32 %v772, 2.0
      %v885 = vmul.f32 %v849, %v857
      %v886 = vmul.f32 %v850, %v858
      %v887 = vmul.f32 %v851, %v859
      %v888 = vmul.f32 %v852, %v860
      %v889 = vmul.f32 %v881, %v885
      %v890 = vmul.f32 %v882, %v886
      %v891 = vmul.f32 %v883, %v887
      %v892 = vmul.f32 %v884, %v888
      %v893 = vsub.f32 %v877, %v889
      %v894 = vsub.f32 %v878, %v890
      %v895 = vsub.f32 %v879, %v891
      %v896 = vsub.f32 %v880, %v892
      %v897 = vmax.f32 %v893, 0.0
      %v898 = vmax.f32 %v894, 0.0
      %v899 = vmax.f32 %v895, 0.0
      %v900 = vmax.f32 %v896, 0.0
      %v901 = vld [vmem:[%s207] sm:$0xff]
      %v902 = vld [vmem:[%s207 + $0x8] sm:$0xff]
      %v903 = vld [vmem:[%s207 + $0x10] sm:$0xff]
      %v904 = vld [vmem:[%s207 + $0x18] sm:$0xff]
      %v905 = vmul.f32 %v897, %v901
      %v906 = vmul.f32 %v898, %v902
      %v907 = vmul.f32 %v899, %v903
      %v908 = vmul.f32 %v900, %v904
      %v909 = vadd.f32 %v905, %v906
      %v910 = vadd.f32 %v909, %v907
      %v911 = vadd.f32 %v910, %v908
      %912 = vadd.xlane.f32.xlu0 %v911
      %v913 = vpop.xlane.xlu0 %912
      %v914 = vrot.slane %v913, 4
      %v915 = vadd.f32 %v913, %v914
      %v916 = vrot.slane %v915, 2
      %v917 = vadd.f32 %v915, %v916
      %v918 = vrot.slane %v917, 1
      %v919 = vadd.f32 %v917, %v918
      %s920 = vtos %v919
      %v921 = vstv %s920
      %922 = vst [vmem:[%s222] sm:$0xff] %v921
      %p923 = scmp.lt.s32.totalorder %s21, 2
      %s924 = scalar_select %p923, %s21, 2
      %s925 = smul.addr %s924, 8
      %s926 = scalar_lea.vmem %s4, %s925
      // Predicated region
      $region33: #{struct_loss_forward.1} parent=31 // pred_check
        %p927 = pneg %p119
      $region34: #{struct_loss_forward.1} parent=31 // pred_check_branch
        %929 = sbr.rel (%p927) target = $region36
      $region35: #{struct_loss_forward.1} parent=31 // pred_region
        _
      $region36: #{struct_loss_forward.1} parent=31 // pred_fallthru
        _
    $region32: #{struct_loss_forward.1} parent=5 // pred_fallthru
      _
    %p930 = scmp.le.s32.totalorder 2, %s16
    // Predicated region
    $region37: #{struct_loss_forward.1} parent=5 // pred_check
      %p931 = pneg %p930
    $region38: #{struct_loss_forward.1} parent=5 // pred_check_branch
      %933 = sbr.rel (%p931) target = $region40
    $region39: #{struct_loss_forward.1} parent=5 // pred_region
      %s934 = ssub.s32 %s16, 2
      // Predicated region
      $region41: #{struct_loss_forward.1} parent=39 // pred_check
        %p935 = pneg %p125
      $region42: #{struct_loss_forward.1} parent=39 // pred_check_branch
        %937 = sbr.rel (%p935) target = $region44
      $region43: #{struct_loss_forward.1} parent=39 // pred_region
        %p938 = scmp.lt.s32.totalorder %s22, 2
        %s939 = scalar_select %p938, %s22, 2
        %s940 = smul.addr %s939, 8
        %s941 = scalar_lea.vmem %s4, %s940
      $region44: #{struct_loss_forward.1} parent=39 // pred_fallthru
        _
    $region40: #{struct_loss_forward.1} parent=5 // pred_fallthru
      _
  $region6: #{struct_loss_forward.1} parent=0 // loop_footer
    %s20 = sadd.s32 1, %s16
  $region7: #{struct_loss_forward.1} parent=0 // loop_footer_branch
    %15 = sbr.rel target = $region3
  $region8: #{struct_loss_forward.1} parent=0 // loop_exit
    _

</llo_original>
